<compile_context>
chip_gen: v7x
topology: tpu7x:2x2x1
jax: 0.10.0
libtpu: 0.0.40
codegen_flags: <defaults>
</compile_context>

<pallas_src>
import functools

import jax
import jax.numpy as jnp
from jax.experimental import pallas as pl
from jax.experimental.pallas import tpu as pltpu

H2_PAD = 128    # 64-wide hidden padded to one full lane width
OUT_PAD = 128   # num_doctypes padded to one full lane width (lane-dense store)


def _round_up(x, m):
    return (x + m - 1) // m * m


def _fused_head_kernel(x_ref, w1_ref, b1_ref, w2_ref, b2_ref, w3_ref, b3_ref,
                       o_ref):
    """Fused 3-layer MLP head on one batch tile.

    x (bf16, lane-dense packed concat) -> relu(x@W1+b1) -> relu(.@W2+b2)
    -> .@W3+b3.  All matmuls bf16 on the MXU with f32 accumulation; all
    bias/ReLU math f32 on the VPU.
    """
    h1 = jnp.dot(x_ref[...], w1_ref[...],
                 preferred_element_type=jnp.float32)
    h1 = jnp.maximum(h1 + b1_ref[...], 0.0)            # (TB, 512), f32

    h2 = jnp.dot(h1.astype(jnp.bfloat16), w2_ref[...],
                 preferred_element_type=jnp.float32)
    h2 = jnp.maximum(h2 + b2_ref[...], 0.0)            # (TB, 128), lane-dense

    out = jnp.dot(h2.astype(jnp.bfloat16), w3_ref[...],
                  preferred_element_type=jnp.float32)
    o_ref[...] = out + b3_ref[...]                     # (TB, 128), lane-dense


def fused_head_pallas(x_bf16, kparams, *, batch_tile=None):
    """Batch-gridded pallas_call.

    Activations/output are tiled over the batch; weights/biases use constant
    index_maps so they stay VMEM resident across grid steps.
    """
    B, k_pad = x_bf16.shape
    w1_p, b1_p, w2_p, b2_p, w3_p, b3_p = kparams
    h1 = w1_p.shape[1]            # 512
    h2 = w2_p.shape[1]            # H2_PAD
    out_w = w3_p.shape[1]         # OUT_PAD

    if batch_tile is None:
        # Production: 128 on v5e, 256+ on v6e/v7x.  Toy batches: one tile,
        # rounded up to 16 rows (bf16 sublane packing).
        batch_tile = 256 if B >= 256 else _round_up(B, 16)
    tb = batch_tile
    b_pad = _round_up(B, tb)
    if b_pad != B:
        x_bf16 = jnp.pad(x_bf16, ((0, b_pad - B), (0, 0)))

    grid = (b_pad // tb,)
    return pl.pallas_call(
        _fused_head_kernel,
        out_shape=jax.ShapeDtypeStruct((b_pad, out_w), jnp.float32),
        grid_spec=pltpu.PrefetchScalarGridSpec(
            num_scalar_prefetch=0,
            grid=grid,
            in_specs=[
                pl.BlockSpec((tb, k_pad), lambda i: (i, 0)),    # activations
                pl.BlockSpec((k_pad, h1), lambda i: (0, 0)),    # W1 (resident)
                pl.BlockSpec((1, h1), lambda i: (0, 0)),        # b1
                pl.BlockSpec((h1, h2), lambda i: (0, 0)),       # W2
                pl.BlockSpec((1, h2), lambda i: (0, 0)),        # b2
                pl.BlockSpec((h2, out_w), lambda i: (0, 0)),    # W3
                pl.BlockSpec((1, out_w), lambda i: (0, 0)),     # b3
            ],
            out_specs=pl.BlockSpec((tb, out_w), lambda i: (i, 0)),
        ),
        compiler_params=pltpu.CompilerParams(
            dimension_semantics=("parallel",),
            # Explicit scoped-VMEM budget: per-step working set is ~3 MB at
            # production tiles, so 32 MiB is safe on v5e/v6e (128 MiB) and
            # v7x (64 MiB physical / 32 MiB scoped default).
            vmem_limit_bytes=32 * 1024 * 1024,
        ),
    )(x_bf16, w1_p, b1_p, w2_p, b2_p, w3_p, b3_p)


def init_linear(key, fan_in, fan_out):
    """Deterministic PyTorch-style nn.Linear init (uniform +-1/sqrt(fan_in))."""
    kw, kb = jax.random.split(key)
    bound = 1.0 / jnp.sqrt(jnp.float32(fan_in))
    w = jax.random.uniform(kw, (fan_in, fan_out), jnp.float32, -bound, bound)
    b = jax.random.uniform(kb, (1, fan_out), jnp.float32, -bound, bound)
    return w, b


def prepare_kernel_params(params, linear_size, k_pad):
    """Module-layout params -> kernel layout (one-time, per checkpoint):
       one lane-dense bf16 W1 of shape (K_PAD, 512) (zero pad rows),
       lane-dense zero-padded bf16 W2/W3 (64->128 hidden, num_doctypes->128),
       f32 biases.  Zero pad rows/cols + ReLU(0)=0 keep the math identical."""
    w1, b1, w2, b2, w3, b3 = params
    h1 = w1.shape[1]   # 512
    w1_p = (jnp.zeros((k_pad, h1), jnp.float32)
            .at[:linear_size, :].set(w1).astype(jnp.bfloat16))
    b1_p = b1.reshape(1, h1).astype(jnp.float32)
    w2_p = (jnp.zeros((h1, H2_PAD), jnp.float32)
            .at[:, :w2.shape[1]].set(w2).astype(jnp.bfloat16))
    b2_p = jnp.zeros((1, H2_PAD), jnp.float32).at[:, :b2.shape[1]].set(b2)
    w3_p = (jnp.zeros((H2_PAD, OUT_PAD), jnp.float32)
            .at[:w3.shape[0], :w3.shape[1]].set(w3).astype(jnp.bfloat16))
    b3_p = jnp.zeros((1, OUT_PAD), jnp.float32).at[:, :b3.shape[1]].set(b3)
    return (w1_p, b1_p, w2_p, b2_p, w3_p, b3_p)


def _pack_features(cls_hidden, category, paragraphs_num, source, words_len,
                   k_pad):
    """torch.cat equivalent, zero-padded to a lane-dense (B, K_PAD) bf16 block
    (pad columns hit zero W1 rows -> exact)."""
    x = jnp.concatenate(
        [cls_hidden.astype(jnp.float32), category.astype(jnp.float32),
         paragraphs_num.astype(jnp.float32), source.astype(jnp.float32),
         words_len.astype(jnp.float32)], axis=1)
    x = jnp.pad(x, ((0, 0), (0, k_pad - x.shape[1])))
    return x.astype(jnp.bfloat16)


@functools.partial(jax.jit, static_argnames=("num_doctypes", "batch_tile"))
def bert_classification_forward(cls_hidden, category, paragraphs_num, source,
                                words_len, kparams, *, num_doctypes,
                                batch_tile=None):
    """Mirrors BertClassificationModel.forward after the BERT encoder:
       cat -> Dropout(eval: identity) -> Linear/ReLU/Linear/ReLU -> Linear.
       Output sliced back to (B, num_doctypes)."""
    k_pad = kparams[0].shape[0]
    x = _pack_features(cls_hidden, category, paragraphs_num, source,
                       words_len, k_pad)
    out_padded = fused_head_pallas(x, kparams, batch_tile=batch_tile)
    return out_padded[:cls_hidden.shape[0], :num_doctypes]


def ref_forward_quantized(x_packed, kparams, num_doctypes):
    """Pure-JAX mirror of the kernel's exact bf16/f32 numerics."""
    w1, b1, w2, b2, w3, b3 = kparams
    h1 = jnp.maximum(
        jnp.dot(x_packed, w1, preferred_element_type=jnp.float32) + b1, 0.0)
    h2 = jnp.maximum(
        jnp.dot(h1.astype(jnp.bfloat16), w2,
                preferred_element_type=jnp.float32) + b2, 0.0)
    out = jnp.dot(h2.astype(jnp.bfloat16), w3,
                  preferred_element_type=jnp.float32) + b3
    return out[:, :num_doctypes]


if __name__ == "__main__":
    # Small, forward-consistent shapes.
    B = 8                 # batch
    hidden_size = 32      # stand-in for BERT hidden 768
    category_size = 8     # len(category_encoder.categories_[0])
    source_size = 16      # len(source_encoder.categories_[0])
    num_doctypes = 10     # len(doctype_list)
    linear_size = hidden_size + category_size + 1 + source_size + 1  # = 58
    k_pad = _round_up(linear_size, 128)                              # = 128

    key = jax.random.PRNGKey(0)
    k_cls, k_cat, k_par, k_src, k_len, k_l1, k_l2, k_l3 = jax.random.split(key, 8)

    # Synthetic "batch_data" features (BERT [CLS] state + tabular features).
    cls_hidden = jax.random.normal(k_cls, (B, hidden_size), jnp.float32)
    category = jax.nn.one_hot(
        jax.random.randint(k_cat, (B,), 0, category_size), category_size,
        dtype=jnp.float32)
    paragraphs_num = jax.random.randint(
        k_par, (B, 1), 1, 20).astype(jnp.float32)
    source = jax.nn.one_hot(
        jax.random.randint(k_src, (B,), 0, source_size), source_size,
        dtype=jnp.float32)
    words_len = jax.random.randint(
        k_len, (B, 1), 10, 500).astype(jnp.float32)

    # Module-layout f32 params (linear_size -> 512 -> 64 -> num_doctypes),
    # converted once (out of the per-request path) to the kernel layout.
    w1, b1 = init_linear(k_l1, linear_size, 512)
    w2, b2 = init_linear(k_l2, 512, 64)
    w3, b3 = init_linear(k_l3, 64, num_doctypes)
    params = (w1, b1, w2, b2, w3, b3)
    kparams = prepare_kernel_params(params, linear_size, k_pad)

    out = bert_classification_forward(
        cls_hidden, category, paragraphs_num, source, words_len, kparams,
        num_doctypes=num_doctypes)
    out = jax.block_until_ready(out)
    assert out.shape == (B, num_doctypes)

    # Check 1 (tight): against a pure-JAX mirror of the kernel's numerics.
    x_packed = _pack_features(cls_hidden, category, paragraphs_num, source,
                              words_len, k_pad)
    ref_q = ref_forward_quantized(x_packed, kparams, num_doctypes)
    assert jnp.allclose(out, ref_q, atol=1e-2, rtol=1e-2)

    # Check 2 (sanity): against the original full-f32 module math; bf16
    # weight + activation quantization only perturbs low-order bits.
    x_cat = jnp.concatenate(
        [cls_hidden, category, paragraphs_num, source, words_len], axis=1)
    h = jnp.maximum(x_cat @ w1 + b1, 0.0)
    h = jnp.maximum(h @ w2 + b2, 0.0)
    ref_f32 = h @ w3 + b3
    assert jnp.allclose(out, ref_f32, atol=1.0, rtol=0.1)

    print("KERNEL_OK")
</pallas_src>

<mosaic_0001>
module attributes {stable_mosaic.version = 11 : i64} {
  func.func @_fused_head_kernel(%arg0: i32, %arg1: memref<16x128xbf16, #tpu.memory_space<vmem>>, %arg2: memref<128x512xbf16, #tpu.memory_space<vmem>>, %arg3: memref<1x512xf32, #tpu.memory_space<vmem>>, %arg4: memref<512x128xbf16, #tpu.memory_space<vmem>>, %arg5: memref<1x128xf32, #tpu.memory_space<vmem>>, %arg6: memref<128x128xbf16, #tpu.memory_space<vmem>>, %arg7: memref<1x128xf32, #tpu.memory_space<vmem>>, %arg8: memref<16x128xf32, #tpu.memory_space<vmem>>) attributes {dimension_semantics = [#tpu.dimension_semantics<parallel>], iteration_bounds = array<i64: 1>, scalar_prefetch = 0 : i64, scratch_operands = 0 : i64, tpu.core_type = #tpu.core_type<tc>, window_params = [{transform_indices = @transform_0, window_bounds = array<i64: 16, 128>}, {pipeline_mode = #tpu.pipeline_mode<synchronous>, transform_indices = @transform_1, window_bounds = array<i64: 128, 512>}, {pipeline_mode = #tpu.pipeline_mode<synchronous>, transform_indices = @transform_2, window_bounds = array<i64: 1, 512>}, {pipeline_mode = #tpu.pipeline_mode<synchronous>, transform_indices = @transform_3, window_bounds = array<i64: 512, 128>}, {pipeline_mode = #tpu.pipeline_mode<synchronous>, transform_indices = @transform_4, window_bounds = array<i64: 1, 128>}, {pipeline_mode = #tpu.pipeline_mode<synchronous>, transform_indices = @transform_5, window_bounds = array<i64: 128, 128>}, {pipeline_mode = #tpu.pipeline_mode<synchronous>, transform_indices = @transform_6, window_bounds = array<i64: 1, 128>}, {transform_indices = @transform_7, window_bounds = array<i64: 16, 128>}]} {
    %c0 = arith.constant 0 : index
    %c0_0 = arith.constant 0 : index
    %0 = vector.load %arg1[%c0, %c0_0] : memref<16x128xbf16, #tpu.memory_space<vmem>>, vector<16x128xbf16>
    %c0_1 = arith.constant 0 : index
    %c0_2 = arith.constant 0 : index
    %1 = vector.load %arg2[%c0_1, %c0_2] : memref<128x512xbf16, #tpu.memory_space<vmem>>, vector<128x512xbf16>
    %cst = arith.constant dense<0.000000e+00> : vector<16x512xf32>
    %2 = tpu.matmul %0, %1, %cst {dimension_numbers = #tpu.dot_dimension_numbers<[1], [0], [0], [1], [0, 0, 1, 1], [], []>} : vector<16x128xbf16>, vector<128x512xbf16>, vector<16x512xf32> -> vector<16x512xf32>
    %c0_3 = arith.constant 0 : index
    %c0_4 = arith.constant 0 : index
    %3 = vector.load %arg3[%c0_3, %c0_4] : memref<1x512xf32, #tpu.memory_space<vmem>>, vector<1x512xf32>
    %4 = vector.broadcast %3 : vector<1x512xf32> to vector<16x512xf32>
    %5 = arith.addf %2, %4 : vector<16x512xf32>
    %cst_5 = arith.constant 0.000000e+00 : f32
    %6 = vector.broadcast %cst_5 : f32 to vector<16x512xf32>
    %7 = arith.maximumf %5, %6 : vector<16x512xf32>
    %8 = arith.truncf %7 : vector<16x512xf32> to vector<16x512xbf16>
    %c0_6 = arith.constant 0 : index
    %c0_7 = arith.constant 0 : index
    %9 = vector.load %arg4[%c0_6, %c0_7] : memref<512x128xbf16, #tpu.memory_space<vmem>>, vector<512x128xbf16>
    %cst_8 = arith.constant dense<0.000000e+00> : vector<16x128xf32>
    %10 = tpu.matmul %8, %9, %cst_8 {dimension_numbers = #tpu.dot_dimension_numbers<[1], [0], [0], [1], [0, 0, 1, 1], [], []>} : vector<16x512xbf16>, vector<512x128xbf16>, vector<16x128xf32> -> vector<16x128xf32>
    %c0_9 = arith.constant 0 : index
    %c0_10 = arith.constant 0 : index
    %11 = vector.load %arg5[%c0_9, %c0_10] : memref<1x128xf32, #tpu.memory_space<vmem>>, vector<1x128xf32>
    %12 = vector.broadcast %11 : vector<1x128xf32> to vector<16x128xf32>
    %13 = arith.addf %10, %12 : vector<16x128xf32>
    %cst_11 = arith.constant 0.000000e+00 : f32
    %14 = vector.broadcast %cst_11 : f32 to vector<16x128xf32>
    %15 = arith.maximumf %13, %14 : vector<16x128xf32>
    %16 = arith.truncf %15 : vector<16x128xf32> to vector<16x128xbf16>
    %c0_12 = arith.constant 0 : index
    %c0_13 = arith.constant 0 : index
    %17 = vector.load %arg6[%c0_12, %c0_13] : memref<128x128xbf16, #tpu.memory_space<vmem>>, vector<128x128xbf16>
    %cst_14 = arith.constant dense<0.000000e+00> : vector<16x128xf32>
    %18 = tpu.matmul %16, %17, %cst_14 {dimension_numbers = #tpu.dot_dimension_numbers<[1], [0], [0], [1], [0, 0, 1, 1], [], []>} : vector<16x128xbf16>, vector<128x128xbf16>, vector<16x128xf32> -> vector<16x128xf32>
    %c0_15 = arith.constant 0 : index
    %c0_16 = arith.constant 0 : index
    %19 = vector.load %arg7[%c0_15, %c0_16] : memref<1x128xf32, #tpu.memory_space<vmem>>, vector<1x128xf32>
    %20 = vector.broadcast %19 : vector<1x128xf32> to vector<16x128xf32>
    %21 = arith.addf %18, %20 : vector<16x128xf32>
    %c0_17 = arith.constant 0 : index
    %c0_18 = arith.constant 0 : index
    %22 = vector.load %arg8[%c0_17, %c0_18] : memref<16x128xf32, #tpu.memory_space<vmem>>, vector<16x128xf32>
    tpu.vector_store %arg8[%c0_17, %c0_18], %21 {strides = array<i32>} : memref<16x128xf32, #tpu.memory_space<vmem>>, vector<16x128xf32>,
    return
  }
  func.func @transform_0(%arg0: i32) -> (i32, i32) {
    %c0_i32 = arith.constant 0 : i32
    %c0_i32_0 = arith.constant 0 : i32
    return %arg0, %c0_i32 : i32, i32
  }
  func.func @transform_1(%arg0: i32) -> (i32, i32) {
    %c0_i32 = arith.constant 0 : i32
    %c0_i32_0 = arith.constant 0 : i32
    %c0_i32_1 = arith.constant 0 : i32
    return %c0_i32, %c0_i32_0 : i32, i32
  }
  func.func @transform_2(%arg0: i32) -> (i32, i32) {
    %c0_i32 = arith.constant 0 : i32
    %c0_i32_0 = arith.constant 0 : i32
    %c0_i32_1 = arith.constant 0 : i32
    return %c0_i32, %c0_i32_0 : i32, i32
  }
  func.func @transform_3(%arg0: i32) -> (i32, i32) {
    %c0_i32 = arith.constant 0 : i32
    %c0_i32_0 = arith.constant 0 : i32
    %c0_i32_1 = arith.constant 0 : i32
    return %c0_i32, %c0_i32_0 : i32, i32
  }
  func.func @transform_4(%arg0: i32) -> (i32, i32) {
    %c0_i32 = arith.constant 0 : i32
    %c0_i32_0 = arith.constant 0 : i32
    %c0_i32_1 = arith.constant 0 : i32
    return %c0_i32, %c0_i32_0 : i32, i32
  }
  func.func @transform_5(%arg0: i32) -> (i32, i32) {
    %c0_i32 = arith.constant 0 : i32
    %c0_i32_0 = arith.constant 0 : i32
    %c0_i32_1 = arith.constant 0 : i32
    return %c0_i32, %c0_i32_0 : i32, i32
  }
  func.func @transform_6(%arg0: i32) -> (i32, i32) {
    %c0_i32 = arith.constant 0 : i32
    %c0_i32_0 = arith.constant 0 : i32
    %c0_i32_1 = arith.constant 0 : i32
    return %c0_i32, %c0_i32_0 : i32, i32
  }
  func.func @transform_7(%arg0: i32) -> (i32, i32) {
    %c0_i32 = arith.constant 0 : i32
    %c0_i32_0 = arith.constant 0 : i32
    return %arg0, %c0_i32 : i32, i32
  }
}

</mosaic_0001>

<llo_original>
// kernel: bert_classification_forward.1
$region0: #{bert_classification_forward.1}
  #allocation0 [shape = 'u32[]', space=smem, size = 0x4, offset = 0x4, fixed_abs, tag = 'smem constant byte address 0x4 - core index']
  #allocation1 [shape = 'u32[144,128]{1,0:T(1,128)}', space=vmem, size = 0x12000, scoped, tag = 'internal scratch']
  %s0 = inlined_call_operand.vmem [shape: bf16[16,128], index: 0, kind: input, shape index: {}]
  %s1 = inlined_call_operand.hbm [shape: bf16[128,512], index: 1, kind: input, shape index: {}]
  %s2 = inlined_call_operand.vmem [shape: f32[1,512], index: 2, kind: input, shape index: {}]
  %s3 = inlined_call_operand.hbm [shape: bf16[512,128], index: 3, kind: input, shape index: {}]
  %s4 = inlined_call_operand.vmem [shape: f32[1,128], index: 4, kind: input, shape index: {}]
  %s5 = inlined_call_operand.vmem [shape: bf16[128,128], index: 5, kind: input, shape index: {}]
  %s6 = inlined_call_operand.vmem [shape: f32[1,128], index: 6, kind: input, shape index: {}]
  %s7 = inlined_call_operand.vmem [shape: f32[16,128], index: 7, kind: output, shape index: {}]
  %s8 = sld [smem:[#allocation0]]
  $region46: #{bert_classification_forward.1} parent=0
    _
  %s10 = ssub.s32 1, %s8
  %s11 = scalar_select 0, %s10, %s8
  $region1: #{bert_classification_forward.1} parent=0
    #allocation2 [shape = 'u8[131072]{0}', space=vmem, size = 0x20000, scoped, tag = 'input window, operand 1, single buffered']
    #allocation3 [shape = 's32[1]{0}', space=sflag, size = 0x4, scoped, tag = 'scoped memory for bert_classification_forward.1']
    #allocation4 [shape = 'u8[131072]{0}', space=vmem, size = 0x20000, scoped, tag = 'input window, operand 3, single buffered']
    #allocation5 [shape = 's32[1]{0}', space=sflag, size = 0x4, scoped, tag = 'scoped memory for bert_classification_forward.1']
    %12 = vsyncpa [#allocation3], 0
    %13 = vsyncpa [#allocation5], 0
    // Predicated region
    $region2: #{bert_classification_forward.1} parent=1 // pred_check
      _
    $region3: #{bert_classification_forward.1} parent=1 // pred_check_branch
      %15 = sbr.rel (0) target = $region5
    $region4: #{bert_classification_forward.1} parent=1 // pred_region
      _
    $region5: #{bert_classification_forward.1} parent=1 // pred_fallthru
      _
    // Predicated region
    $region6: #{bert_classification_forward.1} parent=1 // pred_check
      _
    $region7: #{bert_classification_forward.1} parent=1 // pred_check_branch
      %17 = sbr.rel (0) target = $region9
    $region8: #{bert_classification_forward.1} parent=1 // pred_region
      %s19 = ssub.s32 4096, 4096
      %20 = vsyncadd [#allocation3], %s19
      %s21 = sshll.u32 [#allocation2], 4
      %s22 = int_to_ptr.vmem [resolvable:$true] %s21
      %27 = dma.hbm_to_vmem [thread:$0]  %s1, 4096, %s22, [#allocation3], 256, 256, 16
    $region9: #{bert_classification_forward.1} parent=1 // pred_fallthru
      _
    // Predicated region
    $region10: #{bert_classification_forward.1} parent=1 // pred_check
      _
    $region11: #{bert_classification_forward.1} parent=1 // pred_check_branch
      %29 = sbr.rel (0) target = $region13
    $region12: #{bert_classification_forward.1} parent=1 // pred_region
      _
    $region13: #{bert_classification_forward.1} parent=1 // pred_fallthru
      _
    // Predicated region
    $region14: #{bert_classification_forward.1} parent=1 // pred_check
      _
    $region15: #{bert_classification_forward.1} parent=1 // pred_check_branch
      %31 = sbr.rel (0) target = $region17
    $region16: #{bert_classification_forward.1} parent=1 // pred_region
      %s33 = ssub.s32 4096, 4096
      %34 = vsyncadd [#allocation5], %s33
      %s35 = sshll.u32 [#allocation4], 4
      %s36 = int_to_ptr.vmem [resolvable:$true] %s35
      %41 = dma.hbm_to_vmem [thread:$0]  %s3, 4096, %s36, [#allocation5], 64, 64, 4
    $region17: #{bert_classification_forward.1} parent=1 // pred_fallthru
      _
    // Predicated region
    $region18: #{bert_classification_forward.1} parent=1 // pred_check
      _
    $region19: #{bert_classification_forward.1} parent=1 // pred_check_branch
      %43 = sbr.rel (0) target = $region21
    $region20: #{bert_classification_forward.1} parent=1 // pred_region
      _
    $region21: #{bert_classification_forward.1} parent=1 // pred_fallthru
      _
    // Predicated region
    $region22: #{bert_classification_forward.1} parent=1 // pred_check
      _
    $region23: #{bert_classification_forward.1} parent=1 // pred_check_branch
      %45 = sbr.rel (0) target = $region25
    $region24: #{bert_classification_forward.1} parent=1 // pred_region
      _
    $region25: #{bert_classification_forward.1} parent=1 // pred_fallthru
      _
    // Predicated region
    $region26: #{bert_classification_forward.1} parent=1 // pred_check
      _
    $region27: #{bert_classification_forward.1} parent=1 // pred_check_branch
      %47 = sbr.rel (0) target = $region29
    $region28: #{bert_classification_forward.1} parent=1 // pred_region
      _
    $region29: #{bert_classification_forward.1} parent=1 // pred_fallthru
      _
    // Predicated region
    $region30: #{bert_classification_forward.1} parent=1 // pred_check
      _
    $region31: #{bert_classification_forward.1} parent=1 // pred_check_branch
      %49 = sbr.rel (0) target = $region33
    $region32: #{bert_classification_forward.1} parent=1 // pred_region
      %50 = dma.done [#allocation3], 4096
    $region33: #{bert_classification_forward.1} parent=1 // pred_fallthru
      _
    // Predicated region
    $region34: #{bert_classification_forward.1} parent=1 // pred_check
      _
    $region35: #{bert_classification_forward.1} parent=1 // pred_check_branch
      %52 = sbr.rel (0) target = $region37
    $region36: #{bert_classification_forward.1} parent=1 // pred_region
      %53 = dma.done [#allocation5], 4096
    $region37: #{bert_classification_forward.1} parent=1 // pred_fallthru
      _
    %v55 = vld [vmem:[%s0] sm:$0xf]
    %v56 = vld [vmem:[%s0 + $0x4] sm:$0xf]
    %v57 = vld [vmem:[#allocation2] sm:$0xff]
    %v58 = vld [vmem:[#allocation2 + $0x8] sm:$0xff]
    %v59 = vld [vmem:[#allocation2 + $0x10] sm:$0xff]
    %v60 = vld [vmem:[#allocation2 + $0x18] sm:$0xff]
    %v61 = vld [vmem:[#allocation2 + $0x20] sm:$0xff]
    %v62 = vld [vmem:[#allocation2 + $0x28] sm:$0xff]
    %v63 = vld [vmem:[#allocation2 + $0x30] sm:$0xff]
    %v64 = vld [vmem:[#allocation2 + $0x38] sm:$0xff]
    %v65 = vld [vmem:[#allocation2 + $0x40] sm:$0xff]
    %v66 = vld [vmem:[#allocation2 + $0x48] sm:$0xff]
    %v67 = vld [vmem:[#allocation2 + $0x50] sm:$0xff]
    %v68 = vld [vmem:[#allocation2 + $0x58] sm:$0xff]
    %v69 = vld [vmem:[#allocation2 + $0x60] sm:$0xff]
    %v70 = vld [vmem:[#allocation2 + $0x68] sm:$0xff]
    %v71 = vld [vmem:[#allocation2 + $0x70] sm:$0xff]
    %v72 = vld [vmem:[#allocation2 + $0x78] sm:$0xff]
    %v73 = vld [vmem:[#allocation2 + $0x80] sm:$0xff]
    %v74 = vld [vmem:[#allocation2 + $0x88] sm:$0xff]
    %v75 = vld [vmem:[#allocation2 + $0x90] sm:$0xff]
    %v76 = vld [vmem:[#allocation2 + $0x98] sm:$0xff]
    %v77 = vld [vmem:[#allocation2 + $0xa0] sm:$0xff]
    %v78 = vld [vmem:[#allocation2 + $0xa8] sm:$0xff]
    %v79 = vld [vmem:[#allocation2 + $0xb0] sm:$0xff]
    %v80 = vld [vmem:[#allocation2 + $0xb8] sm:$0xff]
    %v81 = vld [vmem:[#allocation2 + $0xc0] sm:$0xff]
    %v82 = vld [vmem:[#allocation2 + $0xc8] sm:$0xff]
    %v83 = vld [vmem:[#allocation2 + $0xd0] sm:$0xff]
    %v84 = vld [vmem:[#allocation2 + $0xd8] sm:$0xff]
    %v85 = vld [vmem:[#allocation2 + $0xe0] sm:$0xff]
    %v86 = vld [vmem:[#allocation2 + $0xe8] sm:$0xff]
    %v87 = vld [vmem:[#allocation2 + $0xf0] sm:$0xff]
    %v88 = vld [vmem:[#allocation2 + $0xf8] sm:$0xff]
    %v89 = vld [vmem:[%s2] sm:$0xf]
    %v91 = vlaneseq
    %v92 = vshrl.u32 %v91, 7
    %v93 = vsub.s32 0, %v92
    %v94 = vrot.slane %v89, %v93
    %v95 = vlaneseq
    %v96 = vshrl.u32 %v95, 7
    %v97 = vsub.s32 1, %v96
    %v98 = vrot.slane %v89, %v97
    %v99 = vlaneseq
    %v100 = vshrl.u32 %v99, 7
    %v101 = vsub.s32 2, %v100
    %v102 = vrot.slane %v89, %v101
    %v103 = vlaneseq
    %v104 = vshrl.u32 %v103, 7
    %v105 = vsub.s32 3, %v104
    %v106 = vrot.slane %v89, %v105
    %v113 = vunpack.c.l.b16 %v55
    %v114 = vunpack.c.l.b16 %v56
    %v115 = vpack.c.b16 %v114, %v113
    %v149 = vunpack.c.l.b16 %v57
    %v150 = vunpack.c.h.b16 %v57
    %v151 = vunpack.c.l.b16 %v58
    %v152 = vunpack.c.h.b16 %v58
    %v153 = vunpack.c.l.b16 %v59
    %v154 = vunpack.c.h.b16 %v59
    %v155 = vunpack.c.l.b16 %v60
    %v156 = vunpack.c.h.b16 %v60
    %v157 = vunpack.c.l.b16 %v61
    %v158 = vunpack.c.h.b16 %v61
    %v159 = vunpack.c.l.b16 %v62
    %v160 = vunpack.c.h.b16 %v62
    %v161 = vunpack.c.l.b16 %v63
    %v162 = vunpack.c.h.b16 %v63
    %v163 = vunpack.c.l.b16 %v64
    %v164 = vunpack.c.h.b16 %v64
    %v165 = vunpack.c.l.b16 %v65
    %v166 = vunpack.c.h.b16 %v65
    %v167 = vunpack.c.l.b16 %v66
    %v168 = vunpack.c.h.b16 %v66
    %v169 = vunpack.c.l.b16 %v67
    %v170 = vunpack.c.h.b16 %v67
    %v171 = vunpack.c.l.b16 %v68
    %v172 = vunpack.c.h.b16 %v68
    %v173 = vunpack.c.l.b16 %v69
    %v174 = vunpack.c.h.b16 %v69
    %v175 = vunpack.c.l.b16 %v70
    %v176 = vunpack.c.h.b16 %v70
    %v177 = vunpack.c.l.b16 %v71
    %v178 = vunpack.c.h.b16 %v71
    %v179 = vunpack.c.l.b16 %v72
    %v180 = vunpack.c.h.b16 %v72
    %v181 = vunpack.c.l.b16 %v73
    %v182 = vunpack.c.h.b16 %v73
    %v183 = vunpack.c.l.b16 %v74
    %v184 = vunpack.c.h.b16 %v74
    %v185 = vunpack.c.l.b16 %v75
    %v186 = vunpack.c.h.b16 %v75
    %v187 = vunpack.c.l.b16 %v76
    %v188 = vunpack.c.h.b16 %v76
    %v189 = vunpack.c.l.b16 %v77
    %v190 = vunpack.c.h.b16 %v77
    %v191 = vunpack.c.l.b16 %v78
    %v192 = vunpack.c.h.b16 %v78
    %v193 = vunpack.c.l.b16 %v79
    %v194 = vunpack.c.h.b16 %v79
    %v195 = vunpack.c.l.b16 %v80
    %v196 = vunpack.c.h.b16 %v80
    %v197 = vunpack.c.l.b16 %v81
    %v198 = vunpack.c.h.b16 %v81
    %v199 = vunpack.c.l.b16 %v82
    %v200 = vunpack.c.h.b16 %v82
    %v201 = vunpack.c.l.b16 %v83
    %v202 = vunpack.c.h.b16 %v83
    %v203 = vunpack.c.l.b16 %v84
    %v204 = vunpack.c.h.b16 %v84
    %v205 = vunpack.c.l.b16 %v85
    %v206 = vunpack.c.h.b16 %v85
    %v207 = vunpack.c.l.b16 %v86
    %v208 = vunpack.c.h.b16 %v86
    %v209 = vunpack.c.l.b16 %v87
    %v210 = vunpack.c.h.b16 %v87
    %v211 = vunpack.c.l.b16 %v88
    %v212 = vunpack.c.h.b16 %v88
    %v213 = vpack.c.b16 %v153, %v149
    %v214 = vpack.c.b16 %v154, %v150
    %v215 = vpack.c.b16 %v155, %v151
    %v216 = vpack.c.b16 %v156, %v152
    %v217 = vpack.c.b16 %v161, %v157
    %v218 = vpack.c.b16 %v162, %v158
    %v219 = vpack.c.b16 %v163, %v159
    %v220 = vpack.c.b16 %v164, %v160
    %v221 = vpack.c.b16 %v169, %v165
    %v222 = vpack.c.b16 %v170, %v166
    %v223 = vpack.c.b16 %v171, %v167
    %v224 = vpack.c.b16 %v172, %v168
    %v225 = vpack.c.b16 %v177, %v173
    %v226 = vpack.c.b16 %v178, %v174
    %v227 = vpack.c.b16 %v179, %v175
    %v228 = vpack.c.b16 %v180, %v176
    %v229 = vpack.c.b16 %v185, %v181
    %v230 = vpack.c.b16 %v186, %v182
    %v231 = vpack.c.b16 %v187, %v183
    %v232 = vpack.c.b16 %v188, %v184
    %v233 = vpack.c.b16 %v193, %v189
    %v234 = vpack.c.b16 %v194, %v190
    %v235 = vpack.c.b16 %v195, %v191
    %v236 = vpack.c.b16 %v196, %v192
    %v237 = vpack.c.b16 %v201, %v197
    %v238 = vpack.c.b16 %v202, %v198
    %v239 = vpack.c.b16 %v203, %v199
    %v240 = vpack.c.b16 %v204, %v200
    %v241 = vpack.c.b16 %v209, %v205
    %v242 = vpack.c.b16 %v210, %v206
    %v243 = vpack.c.b16 %v211, %v207
    %v244 = vpack.c.b16 %v212, %v208
    %277 = vmatprep.subr.bf16.mxu0 %v214
    %278 = vmatpush1.bf16.msra.mxu0 %v213
    %279 = vmatprep.subr.bf16.mxu0 %v218
    %280 = vmatpush1.bf16.msra.mxu0 %v217
    %281 = vmatprep.subr.bf16.mxu0 %v222
    %282 = vmatpush1.bf16.msra.mxu0 %v221
    %283 = vmatprep.subr.bf16.mxu0 %v226
    %284 = vmatpush1.bf16.msra.mxu0 %v225
    %285 = vmatprep.subr.bf16.mxu0 %v230
    %286 = vmatpush1.bf16.msra.mxu0 %v229
    %287 = vmatprep.subr.bf16.mxu0 %v234
    %288 = vmatpush1.bf16.msra.mxu0 %v233
    %289 = vmatprep.subr.bf16.mxu0 %v238
    %290 = vmatpush1.bf16.msra.mxu0 %v237
    %291 = vmatprep.subr.bf16.mxu0 %v242
    %292 = vmatpush1.bf16.msra.mxu0 %v241
    %293 = vmatprep.subr.bf16.mxu0 0
    %294 = vmatpush1.bf16.msra.mxu0 0
    %295 = vmatprep.subr.bf16.mxu0 0
    %296 = vmatpush1.bf16.msra.mxu0 0
    %297 = vmatprep.subr.bf16.mxu0 0
    %298 = vmatpush1.bf16.msra.mxu0 0
    %299 = vmatprep.subr.bf16.mxu0 0
    %300 = vmatpush1.bf16.msra.mxu0 0
    %301 = vmatprep.subr.bf16.mxu0 0
    %302 = vmatpush1.bf16.msra.mxu0 0
    %303 = vmatprep.subr.bf16.mxu0 0
    %304 = vmatpush1.bf16.msra.mxu0 0
    %305 = vmatprep.subr.bf16.mxu0 0
    %306 = vmatpush1.bf16.msra.mxu0 0
    %307 = vmatprep.subr.bf16.mxu0 0
    %308 = vmatpush1.bf16.msra.mxu0 0
    %309 = vmatprep.mubr.bf16.mxu0 0
    %310 = vmatmul.mubr.bf16.gmra.mrb[0].mxu0 %v115
    %v311 = vpop.f32.mrb[0].mxu0
    %v312 = vadd.f32 %v94, %v311
    %v313 = vpop.f32.mrb[0].mxu0
    %v314 = vadd.f32 %v98, %v313
    %v315 = vpop.f32.mrb[0].mxu0
    %v316 = vadd.f32 %v94, %v315
    %v317 = vpop.f32.mrb[0].mxu0
    %v318 = vadd.f32 %v98, %v317
    %319 = vdwg.mxu0
    %320 = vmatprep.subr.bf16.mxu0 %v216
    %321 = vmatpush1.bf16.msra.mxu0 %v215
    %322 = vmatprep.subr.bf16.mxu0 %v220
    %323 = vmatpush1.bf16.msra.mxu0 %v219
    %324 = vmatprep.subr.bf16.mxu0 %v224
    %325 = vmatpush1.bf16.msra.mxu0 %v223
    %326 = vmatprep.subr.bf16.mxu0 %v228
    %327 = vmatpush1.bf16.msra.mxu0 %v227
    %328 = vmatprep.subr.bf16.mxu0 %v232
    %329 = vmatpush1.bf16.msra.mxu0 %v231
    %330 = vmatprep.subr.bf16.mxu0 %v236
    %331 = vmatpush1.bf16.msra.mxu0 %v235
    %332 = vmatprep.subr.bf16.mxu0 %v240
    %333 = vmatpush1.bf16.msra.mxu0 %v239
    %334 = vmatprep.subr.bf16.mxu0 %v244
    %335 = vmatpush1.bf16.msra.mxu0 %v243
    %336 = vmatprep.subr.bf16.mxu0 0
    %337 = vmatpush1.bf16.msra.mxu0 0
    %338 = vmatprep.subr.bf16.mxu0 0
    %339 = vmatpush1.bf16.msra.mxu0 0
    %340 = vmatprep.subr.bf16.mxu0 0
    %341 = vmatpush1.bf16.msra.mxu0 0
    %342 = vmatprep.subr.bf16.mxu0 0
    %343 = vmatpush1.bf16.msra.mxu0 0
    %344 = vmatprep.subr.bf16.mxu0 0
    %345 = vmatpush1.bf16.msra.mxu0 0
    %346 = vmatprep.subr.bf16.mxu0 0
    %347 = vmatpush1.bf16.msra.mxu0 0
    %348 = vmatprep.subr.bf16.mxu0 0
    %349 = vmatpush1.bf16.msra.mxu0 0
    %350 = vmatprep.subr.bf16.mxu0 0
    %351 = vmatpush1.bf16.msra.mxu0 0
    %352 = vmatprep.mubr.bf16.mxu0 0
    %353 = vmatmul.mubr.bf16.gmra.mrb[0].mxu0 %v115
    %v354 = vpop.f32.mrb[0].mxu0
    %v355 = vadd.f32 %v102, %v354
    %v356 = vpop.f32.mrb[0].mxu0
    %v357 = vadd.f32 %v106, %v356
    %v358 = vpop.f32.mrb[0].mxu0
    %v359 = vadd.f32 %v102, %v358
    %v360 = vpop.f32.mrb[0].mxu0
    %v361 = vadd.f32 %v106, %v360
    %362 = vdwg.mxu0
    %v363 = vmax.f32 %v312, 0.0
    %v364 = vmax.f32 %v314, 0.0
    %v365 = vmax.f32 %v355, 0.0
    %v366 = vmax.f32 %v357, 0.0
    %v367 = vmax.f32 %v316, 0.0
    %v368 = vmax.f32 %v318, 0.0
    %v369 = vmax.f32 %v359, 0.0
    %v370 = vmax.f32 %v361, 0.0
    %v371 = vpack.c.bf16 %v367, %v363
    %v372 = vpack.c.bf16 %v368, %v364
    %v373 = vpack.c.bf16 %v369, %v365
    %v374 = vpack.c.bf16 %v370, %v366
    %v375 = vld [vmem:[#allocation4] sm:$0xf]
    %v376 = vld [vmem:[#allocation4 + $0x4] sm:$0xf]
    %v377 = vld [vmem:[#allocation4 + $0x8] sm:$0xf]
    %v378 = vld [vmem:[#allocation4 + $0xc] sm:$0xf]
    %v379 = vld [vmem:[#allocation4 + $0x10] sm:$0xf]
    %v380 = vld [vmem:[#allocation4 + $0x14] sm:$0xf]
    %v381 = vld [vmem:[#allocation4 + $0x18] sm:$0xf]
    %v382 = vld [vmem:[#allocation4 + $0x1c] sm:$0xf]
    %v383 = vld [vmem:[#allocation4 + $0x20] sm:$0xf]
    %v384 = vld [vmem:[#allocation4 + $0x24] sm:$0xf]
    %v385 = vld [vmem:[#allocation4 + $0x28] sm:$0xf]
    %v386 = vld [vmem:[#allocation4 + $0x2c] sm:$0xf]
    %v387 = vld [vmem:[#allocation4 + $0x30] sm:$0xf]
    %v388 = vld [vmem:[#allocation4 + $0x34] sm:$0xf]
    %v389 = vld [vmem:[#allocation4 + $0x38] sm:$0xf]
    %v390 = vld [vmem:[#allocation4 + $0x3c] sm:$0xf]
    %v391 = vld [vmem:[#allocation4 + $0x40] sm:$0xf]
    %v392 = vld [vmem:[#allocation4 + $0x44] sm:$0xf]
    %v393 = vld [vmem:[#allocation4 + $0x48] sm:$0xf]
    %v394 = vld [vmem:[#allocation4 + $0x4c] sm:$0xf]
    %v395 = vld [vmem:[#allocation4 + $0x50] sm:$0xf]
    %v396 = vld [vmem:[#allocation4 + $0x54] sm:$0xf]
    %v397 = vld [vmem:[#allocation4 + $0x58] sm:$0xf]
    %v398 = vld [vmem:[#allocation4 + $0x5c] sm:$0xf]
    %v399 = vld [vmem:[#allocation4 + $0x60] sm:$0xf]
    %v400 = vld [vmem:[#allocation4 + $0x64] sm:$0xf]
    %v401 = vld [vmem:[#allocation4 + $0x68] sm:$0xf]
    %v402 = vld [vmem:[#allocation4 + $0x6c] sm:$0xf]
    %v403 = vld [vmem:[#allocation4 + $0x70] sm:$0xf]
    %v404 = vld [vmem:[#allocation4 + $0x74] sm:$0xf]
    %v405 = vld [vmem:[#allocation4 + $0x78] sm:$0xf]
    %v406 = vld [vmem:[#allocation4 + $0x7c] sm:$0xf]
    %v407 = vld [vmem:[#allocation4 + $0x80] sm:$0xf]
    %v408 = vld [vmem:[#allocation4 + $0x84] sm:$0xf]
    %v409 = vld [vmem:[#allocation4 + $0x88] sm:$0xf]
    %v410 = vld [vmem:[#allocation4 + $0x8c] sm:$0xf]
    %v411 = vld [vmem:[#allocation4 + $0x90] sm:$0xf]
    %v412 = vld [vmem:[#allocation4 + $0x94] sm:$0xf]
    %v413 = vld [vmem:[#allocation4 + $0x98] sm:$0xf]
    %v414 = vld [vmem:[#allocation4 + $0x9c] sm:$0xf]
    %v415 = vld [vmem:[#allocation4 + $0xa0] sm:$0xf]
    %v416 = vld [vmem:[#allocation4 + $0xa4] sm:$0xf]
    %v417 = vld [vmem:[#allocation4 + $0xa8] sm:$0xf]
    %v418 = vld [vmem:[#allocation4 + $0xac] sm:$0xf]
    %v419 = vld [vmem:[#allocation4 + $0xb0] sm:$0xf]
    %v420 = vld [vmem:[#allocation4 + $0xb4] sm:$0xf]
    %v421 = vld [vmem:[#allocation4 + $0xb8] sm:$0xf]
    %v422 = vld [vmem:[#allocation4 + $0xbc] sm:$0xf]
    %v423 = vld [vmem:[#allocation4 + $0xc0] sm:$0xf]
    %v424 = vld [vmem:[#allocation4 + $0xc4] sm:$0xf]
    %v425 = vld [vmem:[#allocation4 + $0xc8] sm:$0xf]
    %v426 = vld [vmem:[#allocation4 + $0xcc] sm:$0xf]
    %v427 = vld [vmem:[#allocation4 + $0xd0] sm:$0xf]
    %v428 = vld [vmem:[#allocation4 + $0xd4] sm:$0xf]
    %v429 = vld [vmem:[#allocation4 + $0xd8] sm:$0xf]
    %v430 = vld [vmem:[#allocation4 + $0xdc] sm:$0xf]
    %v431 = vld [vmem:[#allocation4 + $0xe0] sm:$0xf]
    %v432 = vld [vmem:[#allocation4 + $0xe4] sm:$0xf]
    %v433 = vld [vmem:[#allocation4 + $0xe8] sm:$0xf]
    %v434 = vld [vmem:[#allocation4 + $0xec] sm:$0xf]
    %v435 = vld [vmem:[#allocation4 + $0xf0] sm:$0xf]
    %v436 = vld [vmem:[#allocation4 + $0xf4] sm:$0xf]
    %v437 = vld [vmem:[#allocation4 + $0xf8] sm:$0xf]
    %v438 = vld [vmem:[#allocation4 + $0xfc] sm:$0xf]
    %v439 = vld [vmem:[%s4] sm:$0x1]
    %v441 = vlaneseq
    %v442 = vshrl.u32 %v441, 7
    %v443 = vsub.s32 0, %v442
    %v444 = vrot.slane %v439, %v443
    %v510 = vunpack.c.l.b16 %v375
    %v511 = vunpack.c.l.b16 %v376
    %v512 = vunpack.c.l.b16 %v377
    %v513 = vunpack.c.l.b16 %v378
    %v514 = vunpack.c.l.b16 %v379
    %v515 = vunpack.c.l.b16 %v380
    %v516 = vunpack.c.l.b16 %v381
    %v517 = vunpack.c.l.b16 %v382
    %v518 = vunpack.c.l.b16 %v383
    %v519 = vunpack.c.l.b16 %v384
    %v520 = vunpack.c.l.b16 %v385
    %v521 = vunpack.c.l.b16 %v386
    %v522 = vunpack.c.l.b16 %v387
    %v523 = vunpack.c.l.b16 %v388
    %v524 = vunpack.c.l.b16 %v389
    %v525 = vunpack.c.l.b16 %v390
    %v526 = vunpack.c.l.b16 %v391
    %v527 = vunpack.c.l.b16 %v392
    %v528 = vunpack.c.l.b16 %v393
    %v529 = vunpack.c.l.b16 %v394
    %v530 = vunpack.c.l.b16 %v395
    %v531 = vunpack.c.l.b16 %v396
    %v532 = vunpack.c.l.b16 %v397
    %v533 = vunpack.c.l.b16 %v398
    %v534 = vunpack.c.l.b16 %v399
    %v535 = vunpack.c.l.b16 %v400
    %v536 = vunpack.c.l.b16 %v401
    %v537 = vunpack.c.l.b16 %v402
    %v538 = vunpack.c.l.b16 %v403
    %v539 = vunpack.c.l.b16 %v404
    %v540 = vunpack.c.l.b16 %v405
    %v541 = vunpack.c.l.b16 %v406
    %v542 = vunpack.c.l.b16 %v407
    %v543 = vunpack.c.l.b16 %v408
    %v544 = vunpack.c.l.b16 %v409
    %v545 = vunpack.c.l.b16 %v410
    %v546 = vunpack.c.l.b16 %v411
    %v547 = vunpack.c.l.b16 %v412
    %v548 = vunpack.c.l.b16 %v413
    %v549 = vunpack.c.l.b16 %v414
    %v550 = vunpack.c.l.b16 %v415
    %v551 = vunpack.c.l.b16 %v416
    %v552 = vunpack.c.l.b16 %v417
    %v553 = vunpack.c.l.b16 %v418
    %v554 = vunpack.c.l.b16 %v419
    %v555 = vunpack.c.l.b16 %v420
    %v556 = vunpack.c.l.b16 %v421
    %v557 = vunpack.c.l.b16 %v422
    %v558 = vunpack.c.l.b16 %v423
    %v559 = vunpack.c.l.b16 %v424
    %v560 = vunpack.c.l.b16 %v425
    %v561 = vunpack.c.l.b16 %v426
    %v562 = vunpack.c.l.b16 %v427
    %v563 = vunpack.c.l.b16 %v428
    %v564 = vunpack.c.l.b16 %v429
    %v565 = vunpack.c.l.b16 %v430
    %v566 = vunpack.c.l.b16 %v431
    %v567 = vunpack.c.l.b16 %v432
    %v568 = vunpack.c.l.b16 %v433
    %v569 = vunpack.c.l.b16 %v434
    %v570 = vunpack.c.l.b16 %v435
    %v571 = vunpack.c.l.b16 %v436
    %v572 = vunpack.c.l.b16 %v437
    %v573 = vunpack.c.l.b16 %v438
    %v574 = vpack.c.b16 %v511, %v510
    %v575 = vpack.c.b16 %v513, %v512
    %v576 = vpack.c.b16 %v515, %v514
    %v577 = vpack.c.b16 %v517, %v516
    %v578 = vpack.c.b16 %v519, %v518
    %v579 = vpack.c.b16 %v521, %v520
    %v580 = vpack.c.b16 %v523, %v522
    %v581 = vpack.c.b16 %v525, %v524
    %v582 = vpack.c.b16 %v527, %v526
    %v583 = vpack.c.b16 %v529, %v528
    %v584 = vpack.c.b16 %v531, %v530
    %v585 = vpack.c.b16 %v533, %v532
    %v586 = vpack.c.b16 %v535, %v534
    %v587 = vpack.c.b16 %v537, %v536
    %v588 = vpack.c.b16 %v539, %v538
    %v589 = vpack.c.b16 %v541, %v540
    %v590 = vpack.c.b16 %v543, %v542
    %v591 = vpack.c.b16 %v545, %v544
    %v592 = vpack.c.b16 %v547, %v546
    %v593 = vpack.c.b16 %v549, %v548
    %v594 = vpack.c.b16 %v551, %v550
    %v595 = vpack.c.b16 %v553, %v552
    %v596 = vpack.c.b16 %v555, %v554
    %v597 = vpack.c.b16 %v557, %v556
    %v598 = vpack.c.b16 %v559, %v558
    %v599 = vpack.c.b16 %v561, %v560
    %v600 = vpack.c.b16 %v563, %v562
    %v601 = vpack.c.b16 %v565, %v564
    %v602 = vpack.c.b16 %v567, %v566
    %v603 = vpack.c.b16 %v569, %v568
    %v604 = vpack.c.b16 %v571, %v570
    %v605 = vpack.c.b16 %v573, %v572
    %638 = vmatprep.subr.bf16.mxu0 0
    %639 = vmatpush1.bf16.msra.mxu0 %v574
    %640 = vmatprep.subr.bf16.mxu0 0
    %641 = vmatpush1.bf16.msra.mxu0 %v575
    %642 = vmatprep.subr.bf16.mxu0 0
    %643 = vmatpush1.bf16.msra.mxu0 %v576
    %644 = vmatprep.subr.bf16.mxu0 0
    %645 = vmatpush1.bf16.msra.mxu0 %v577
    %646 = vmatprep.subr.bf16.mxu0 0
    %647 = vmatpush1.bf16.msra.mxu0 %v578
    %648 = vmatprep.subr.bf16.mxu0 0
    %649 = vmatpush1.bf16.msra.mxu0 %v579
    %650 = vmatprep.subr.bf16.mxu0 0
    %651 = vmatpush1.bf16.msra.mxu0 %v580
    %652 = vmatprep.subr.bf16.mxu0 0
    %653 = vmatpush1.bf16.msra.mxu0 %v581
    %654 = vmatprep.subr.bf16.mxu0 0
    %655 = vmatpush1.bf16.msra.mxu0 %v582
    %656 = vmatprep.subr.bf16.mxu0 0
    %657 = vmatpush1.bf16.msra.mxu0 %v583
    %658 = vmatprep.subr.bf16.mxu0 0
    %659 = vmatpush1.bf16.msra.mxu0 %v584
    %660 = vmatprep.subr.bf16.mxu0 0
    %661 = vmatpush1.bf16.msra.mxu0 %v585
    %662 = vmatprep.subr.bf16.mxu0 0
    %663 = vmatpush1.bf16.msra.mxu0 %v586
    %664 = vmatprep.subr.bf16.mxu0 0
    %665 = vmatpush1.bf16.msra.mxu0 %v587
    %666 = vmatprep.subr.bf16.mxu0 0
    %667 = vmatpush1.bf16.msra.mxu0 %v588
    %668 = vmatprep.subr.bf16.mxu0 0
    %669 = vmatpush1.bf16.msra.mxu0 %v589
    %670 = vmatprep.mubr.bf16.mxu0 %v372
    %671 = vmatmul.mubr.bf16.gmra.mrb[0].mxu0 %v371
    %v672 = vpop.f32.mrb[0].mxu0
    %v673 = vadd.f32 %v444, %v672
    %v674 = vpop.f32.mrb[0].mxu0
    %v675 = vpop.f32.mrb[0].mxu0
    %v676 = vadd.f32 %v444, %v675
    %v677 = vpop.f32.mrb[0].mxu0
    %678 = vdwg.mxu0
    %679 = vmatprep.subr.bf16.mxu0 0
    %680 = vmatpush1.bf16.msra.mxu0 %v590
    %681 = vmatprep.subr.bf16.mxu0 0
    %682 = vmatpush1.bf16.msra.mxu0 %v591
    %683 = vmatprep.subr.bf16.mxu0 0
    %684 = vmatpush1.bf16.msra.mxu0 %v592
    %685 = vmatprep.subr.bf16.mxu0 0
    %686 = vmatpush1.bf16.msra.mxu0 %v593
    %687 = vmatprep.subr.bf16.mxu0 0
    %688 = vmatpush1.bf16.msra.mxu0 %v594
    %689 = vmatprep.subr.bf16.mxu0 0
    %690 = vmatpush1.bf16.msra.mxu0 %v595
    %691 = vmatprep.subr.bf16.mxu0 0
    %692 = vmatpush1.bf16.msra.mxu0 %v596
    %693 = vmatprep.subr.bf16.mxu0 0
    %694 = vmatpush1.bf16.msra.mxu0 %v597
    %695 = vmatprep.subr.bf16.mxu0 0
    %696 = vmatpush1.bf16.msra.mxu0 %v598
    %697 = vmatprep.subr.bf16.mxu0 0
    %698 = vmatpush1.bf16.msra.mxu0 %v599
    %699 = vmatprep.subr.bf16.mxu0 0
    %700 = vmatpush1.bf16.msra.mxu0 %v600
    %701 = vmatprep.subr.bf16.mxu0 0
    %702 = vmatpush1.bf16.msra.mxu0 %v601
    %703 = vmatprep.subr.bf16.mxu0 0
    %704 = vmatpush1.bf16.msra.mxu0 %v602
    %705 = vmatprep.subr.bf16.mxu0 0
    %706 = vmatpush1.bf16.msra.mxu0 %v603
    %707 = vmatprep.subr.bf16.mxu0 0
    %708 = vmatpush1.bf16.msra.mxu0 %v604
    %709 = vmatprep.subr.bf16.mxu0 0
    %710 = vmatpush1.bf16.msra.mxu0 %v605
    %711 = vmatprep.mubr.bf16.mxu0 %v374
    %712 = vmatmul.mubr.bf16.gmra.mrb[0].mxu0 %v373
    %v713 = vpop.f32.mrb[0].mxu0
    %v714 = vadd.f32 %v673, %v713
    %v715 = vpop.f32.mrb[0].mxu0
    %v716 = vpop.f32.mrb[0].mxu0
    %v717 = vadd.f32 %v676, %v716
    %v718 = vpop.f32.mrb[0].mxu0
    %719 = vdwg.mxu0
    %v720 = vmax.f32 %v714, 0.0
    %v721 = vmax.f32 %v717, 0.0
    %v722 = vpack.c.bf16 %v721, %v720
    %v723 = vld [vmem:[%s5] sm:$0xf]
    %v724 = vld [vmem:[%s5 + $0x4] sm:$0xf]
    %v725 = vld [vmem:[%s5 + $0x8] sm:$0xf]
    %v726 = vld [vmem:[%s5 + $0xc] sm:$0xf]
    %v727 = vld [vmem:[%s5 + $0x10] sm:$0xf]
    %v728 = vld [vmem:[%s5 + $0x14] sm:$0xf]
    %v729 = vld [vmem:[%s5 + $0x18] sm:$0xf]
    %v730 = vld [vmem:[%s5 + $0x1c] sm:$0xf]
    %v731 = vld [vmem:[%s5 + $0x20] sm:$0xf]
    %v732 = vld [vmem:[%s5 + $0x24] sm:$0xf]
    %v733 = vld [vmem:[%s5 + $0x28] sm:$0xf]
    %v734 = vld [vmem:[%s5 + $0x2c] sm:$0xf]
    %v735 = vld [vmem:[%s5 + $0x30] sm:$0xf]
    %v736 = vld [vmem:[%s5 + $0x34] sm:$0xf]
    %v737 = vld [vmem:[%s5 + $0x38] sm:$0xf]
    %v738 = vld [vmem:[%s5 + $0x3c] sm:$0xf]
    %v739 = vld [vmem:[%s6] sm:$0x1]
    %v741 = vlaneseq
    %v742 = vshrl.u32 %v741, 7
    %v743 = vsub.s32 0, %v742
    %v744 = vrot.slane %v739, %v743
    %v762 = vunpack.c.l.b16 %v723
    %v763 = vunpack.c.l.b16 %v724
    %v764 = vunpack.c.l.b16 %v725
    %v765 = vunpack.c.l.b16 %v726
    %v766 = vunpack.c.l.b16 %v727
    %v767 = vunpack.c.l.b16 %v728
    %v768 = vunpack.c.l.b16 %v729
    %v769 = vunpack.c.l.b16 %v730
    %v770 = vunpack.c.l.b16 %v731
    %v771 = vunpack.c.l.b16 %v732
    %v772 = vunpack.c.l.b16 %v733
    %v773 = vunpack.c.l.b16 %v734
    %v774 = vunpack.c.l.b16 %v735
    %v775 = vunpack.c.l.b16 %v736
    %v776 = vunpack.c.l.b16 %v737
    %v777 = vunpack.c.l.b16 %v738
    %v778 = vpack.c.b16 %v763, %v762
    %v779 = vpack.c.b16 %v765, %v764
    %v780 = vpack.c.b16 %v767, %v766
    %v781 = vpack.c.b16 %v769, %v768
    %v782 = vpack.c.b16 %v771, %v770
    %v783 = vpack.c.b16 %v773, %v772
    %v784 = vpack.c.b16 %v775, %v774
    %v785 = vpack.c.b16 %v777, %v776
    %794 = vmatprep.subr.bf16.mxu0 0
    %795 = vmatpush1.bf16.msra.mxu0 %v778
    %796 = vmatprep.subr.bf16.mxu0 0
    %797 = vmatpush1.bf16.msra.mxu0 %v779
    %798 = vmatprep.subr.bf16.mxu0 0
    %799 = vmatpush1.bf16.msra.mxu0 %v780
    %800 = vmatprep.subr.bf16.mxu0 0
    %801 = vmatpush1.bf16.msra.mxu0 %v781
    %802 = vmatprep.subr.bf16.mxu0 0
    %803 = vmatpush1.bf16.msra.mxu0 %v782
    %804 = vmatprep.subr.bf16.mxu0 0
    %805 = vmatpush1.bf16.msra.mxu0 %v783
    %806 = vmatprep.subr.bf16.mxu0 0
    %807 = vmatpush1.bf16.msra.mxu0 %v784
    %808 = vmatprep.subr.bf16.mxu0 0
    %809 = vmatpush1.bf16.msra.mxu0 %v785
    %810 = vmatprep.subr.bf16.mxu0 0
    %811 = vmatpush1.bf16.msra.mxu0 0
    %812 = vmatprep.subr.bf16.mxu0 0
    %813 = vmatpush1.bf16.msra.mxu0 0
    %814 = vmatprep.subr.bf16.mxu0 0
    %815 = vmatpush1.bf16.msra.mxu0 0
    %816 = vmatprep.subr.bf16.mxu0 0
    %817 = vmatpush1.bf16.msra.mxu0 0
    %818 = vmatprep.subr.bf16.mxu0 0
    %819 = vmatpush1.bf16.msra.mxu0 0
    %820 = vmatprep.subr.bf16.mxu0 0
    %821 = vmatpush1.bf16.msra.mxu0 0
    %822 = vmatprep.subr.bf16.mxu0 0
    %823 = vmatpush1.bf16.msra.mxu0 0
    %824 = vmatprep.subr.bf16.mxu0 0
    %825 = vmatpush1.bf16.msra.mxu0 0
    %826 = vmatprep.mubr.bf16.mxu0 0
    %827 = vmatmul.mubr.bf16.gmra.mrb[0].mxu0 %v722
    %v828 = vpop.f32.mrb[0].mxu0
    %v829 = vadd.f32 %v744, %v828
    %v830 = vpop.f32.mrb[0].mxu0
    %v831 = vpop.f32.mrb[0].mxu0
    %v832 = vadd.f32 %v744, %v831
    %v833 = vpop.f32.mrb[0].mxu0
    %834 = vdwg.mxu0
    %835 = vst [vmem:[%s7] sm:$0xff] %v829
    %836 = vst [vmem:[%s7 + $0x8] sm:$0xff] %v832
    // Predicated region
    $region38: #{bert_classification_forward.1} parent=1 // pred_check
      _
    $region39: #{bert_classification_forward.1} parent=1 // pred_check_branch
      %838 = sbr.rel (0) target = $region41
    $region40: #{bert_classification_forward.1} parent=1 // pred_region
      _
    $region41: #{bert_classification_forward.1} parent=1 // pred_fallthru
      _
    // Predicated region
    $region42: #{bert_classification_forward.1} parent=1 // pred_check
      _
    $region43: #{bert_classification_forward.1} parent=1 // pred_check_branch
      %840 = sbr.rel (0) target = $region45
    $region44: #{bert_classification_forward.1} parent=1 // pred_region
      _
    $region45: #{bert_classification_forward.1} parent=1 // pred_fallthru
      _
    %841 = vsyncpa [#allocation3], 1
    %842 = vsyncpa [#allocation5], 1

</llo_original>
